<compile_context>
chip_gen: v5e
topology: v5e:2x2
jax: 0.10.0
libtpu: 0.0.40
codegen_flags: <defaults>
</compile_context>

<pallas_src>
import functools

import jax
import jax.numpy as jnp
from jax.experimental import pallas as pl
from jax.experimental.pallas import tpu as pltpu


def _round_up(x, m):
    return ((x + m - 1) // m) * m


def _block_diag(a, b):
    za = jnp.zeros((a.shape[0], b.shape[1]), a.dtype)
    zb = jnp.zeros((b.shape[0], a.shape[1]), b.dtype)
    top = jnp.concatenate([a, za], axis=1)
    bot = jnp.concatenate([zb, b], axis=1)
    return jnp.concatenate([top, bot], axis=0)


def soft_q_kernel(o_ref, a_ref,
                  w1o_ref, w1a_ref, b1_ref,
                  w2_ref, b2_ref,
                  w3_ref, b3_ref,
                  out_ref):
    # Layer 1: split-W1 avoids the lane-axis concat of o and a.
    h = (jnp.dot(o_ref[...], w1o_ref[...], preferred_element_type=jnp.float32)
         + jnp.dot(a_ref[...], w1a_ref[...], preferred_element_type=jnp.float32)
         + b1_ref[...])
    h = jnp.maximum(h, 0.0)
    # Layer 2 (block-diagonal over the fused twin nets).
    h = jnp.dot(h, w2_ref[...], preferred_element_type=jnp.float32) + b2_ref[...]
    h = jnp.maximum(h, 0.0)
    # Output heads, fused: [TB, 2] (col 0 = q1, col 1 = q2).
    q = jnp.dot(h, w3_ref[...], preferred_element_type=jnp.float32) + b3_ref[...]
    out_ref[...] = q.astype(out_ref.dtype)


@functools.partial(jax.jit, static_argnames=("block_b",))
def soft_q_forward(o, a, params, *, block_b=1024):
    """Returns (q1, q2), each [B, 1] float32."""
    B, obs_dim = o.shape
    act_dim = a.shape[1]

    # ---- fuse the twin Q-networks into one wide MLP (wrapper-side, cheap) ----
    p1, p2 = params["q1"], params["q2"]
    w1 = jnp.concatenate([p1["w1"], p2["w1"]], axis=1)       # [d_in, 2H]
    w1o, w1a = w1[:obs_dim], w1[obs_dim:]                    # split -> no in-kernel concat
    b1 = jnp.concatenate([p1["b1"], p2["b1"]], axis=1)       # [1, 2H]
    w2 = _block_diag(p1["w2"], p2["w2"])                     # [2H, 2H]
    b2 = jnp.concatenate([p1["b2"], p2["b2"]], axis=1)       # [1, 2H]
    w3 = _block_diag(p1["w3"], p2["w3"])                     # [2H, 2]
    b3 = jnp.concatenate([p1["b3"], p2["b3"]], axis=1)       # [1, 2]

    # ---- batch tiling: pad B to a multiple of the batch tile ----
    tb = min(block_b, _round_up(B, 8))
    bp = _round_up(B, tb)
    if bp != B:
        o = jnp.pad(o, ((0, bp - B), (0, 0)))
        a = jnp.pad(a, ((0, bp - B), (0, 0)))

    grid = (pl.cdiv(bp, tb),)

    def batch_spec(cols):
        return pl.BlockSpec((tb, cols), lambda i: (i, 0))

    def resident_spec(arr):
        # Full-array block, constant index -> stays resident in VMEM.
        return pl.BlockSpec(arr.shape, lambda i: (0, 0))

    # NOTE: keeping f32 inputs so numerics match the reference exactly; for
    # large replay-buffer batches a bf16 cast of o/a here would halve HBM
    # traffic (keep preferred_element_type=f32 for accumulation).
    out = pl.pallas_call(
        soft_q_kernel,
        out_shape=jax.ShapeDtypeStruct((bp, 2), jnp.float32),
        grid=grid,
        in_specs=[
            batch_spec(obs_dim), batch_spec(act_dim),
            resident_spec(w1o), resident_spec(w1a), resident_spec(b1),
            resident_spec(w2), resident_spec(b2),
            resident_spec(w3), resident_spec(b3),
        ],
        out_specs=pl.BlockSpec((tb, 2), lambda i: (i, 0)),
        compiler_params=pltpu.CompilerParams(
            dimension_semantics=("parallel",)),
    )(o, a, w1o, w1a, b1, w2, b2, w3, b3)

    q = out[:B]
    return q[:, 0:1], q[:, 1:2]


def init_mlp_params(key, d_in, hidden, d_out):
    k1, k2, k3 = jax.random.split(key, 3)

    def lin(k, fan_in, fan_out):
        bound = 1.0 / jnp.sqrt(fan_in)
        return jax.random.uniform(k, (fan_in, fan_out), jnp.float32,
                                  minval=-bound, maxval=bound)

    return {
        "w1": lin(k1, d_in, hidden),   "b1": jnp.zeros((1, hidden), jnp.float32),
        "w2": lin(k2, hidden, hidden), "b2": jnp.zeros((1, hidden), jnp.float32),
        "w3": lin(k3, hidden, d_out),  "b3": jnp.zeros((1, d_out), jnp.float32),
    }


def reference_forward(o, a, params):
    x = jnp.concatenate([o, a], axis=-1)
    outs = []
    for name in ("q1", "q2"):
        p = params[name]
        h = jnp.maximum(x @ p["w1"] + p["b1"], 0.0)
        h = jnp.maximum(h @ p["w2"] + p["b2"], 0.0)
        outs.append(h @ p["w3"] + p["b3"])
    return tuple(outs)


if __name__ == "__main__":
    obs_dim, act_dim, hidden = 24, 8, 32

    key = jax.random.PRNGKey(0)
    k_o, k_a, k_q1, k_q2 = jax.random.split(key, 4)

    params = {
        "q1": init_mlp_params(k_q1, obs_dim + act_dim, hidden, 1),
        "q2": init_mlp_params(k_q2, obs_dim + act_dim, hidden, 1),
    }

    # --- small test (B=2, single tile, exercises tail padding) ---
    B = 2
    o = jax.random.normal(k_o, (B, obs_dim), jnp.float32)
    a = jax.random.normal(k_a, (B, act_dim), jnp.float32)

    q1, q2 = soft_q_forward(o, a, params)
    jax.block_until_ready((q1, q2))

    r1, r2 = reference_forward(o, a, params)
    assert q1.shape == (B, 1) and q2.shape == (B, 1)
    assert jnp.allclose(q1, r1, atol=1e-4, rtol=1e-4)
    assert jnp.allclose(q2, r2, atol=1e-4, rtol=1e-4)

    # --- larger test (B=300, block_b=128 -> 3 grid steps + padded tail) ---
    B2 = 300
    o2 = jax.random.normal(k_o, (B2, obs_dim), jnp.float32)
    a2 = jax.random.normal(k_a, (B2, act_dim), jnp.float32)

    q1b, q2b = soft_q_forward(o2, a2, params, block_b=128)
    jax.block_until_ready((q1b, q2b))

    r1b, r2b = reference_forward(o2, a2, params)
    assert q1b.shape == (B2, 1) and q2b.shape == (B2, 1)
    assert jnp.allclose(q1b, r1b, atol=1e-4, rtol=1e-4)
    assert jnp.allclose(q2b, r2b, atol=1e-4, rtol=1e-4)

    print("KERNEL_OK")
</pallas_src>

<mosaic_0001>
module attributes {stable_mosaic.version = 11 : i64} {
  func.func @soft_q_kernel(%arg0: i32, %arg1: memref<8x24xf32, #tpu.memory_space<vmem>>, %arg2: memref<8x8xf32, #tpu.memory_space<vmem>>, %arg3: memref<24x64xf32, #tpu.memory_space<vmem>>, %arg4: memref<8x64xf32, #tpu.memory_space<vmem>>, %arg5: memref<1x64xf32, #tpu.memory_space<vmem>>, %arg6: memref<64x64xf32, #tpu.memory_space<vmem>>, %arg7: memref<1x64xf32, #tpu.memory_space<vmem>>, %arg8: memref<64x2xf32, #tpu.memory_space<vmem>>, %arg9: memref<1x2xf32, #tpu.memory_space<vmem>>, %arg10: memref<8x2xf32, #tpu.memory_space<vmem>>) attributes {dimension_semantics = [#tpu.dimension_semantics<parallel>], iteration_bounds = array<i64: 1>, scalar_prefetch = 0 : i64, scratch_operands = 0 : i64, tpu.core_type = #tpu.core_type<tc>, window_params = [{transform_indices = @transform_0, window_bounds = array<i64: 8, 24>}, {transform_indices = @transform_1, window_bounds = array<i64: 8, 8>}, {pipeline_mode = #tpu.pipeline_mode<synchronous>, transform_indices = @transform_2, window_bounds = array<i64: 24, 64>}, {pipeline_mode = #tpu.pipeline_mode<synchronous>, transform_indices = @transform_3, window_bounds = array<i64: 8, 64>}, {pipeline_mode = #tpu.pipeline_mode<synchronous>, transform_indices = @transform_4, window_bounds = array<i64: 1, 64>}, {pipeline_mode = #tpu.pipeline_mode<synchronous>, transform_indices = @transform_5, window_bounds = array<i64: 64, 64>}, {pipeline_mode = #tpu.pipeline_mode<synchronous>, transform_indices = @transform_6, window_bounds = array<i64: 1, 64>}, {pipeline_mode = #tpu.pipeline_mode<synchronous>, transform_indices = @transform_7, window_bounds = array<i64: 64, 2>}, {pipeline_mode = #tpu.pipeline_mode<synchronous>, transform_indices = @transform_8, window_bounds = array<i64: 1, 2>}, {transform_indices = @transform_9, window_bounds = array<i64: 8, 2>}]} {
    %c0 = arith.constant 0 : index
    %c0_0 = arith.constant 0 : index
    %0 = vector.load %arg1[%c0, %c0_0] : memref<8x24xf32, #tpu.memory_space<vmem>>, vector<8x24xf32>
    %c0_1 = arith.constant 0 : index
    %c0_2 = arith.constant 0 : index
    %1 = vector.load %arg3[%c0_1, %c0_2] : memref<24x64xf32, #tpu.memory_space<vmem>>, vector<24x64xf32>
    %cst = arith.constant dense<0.000000e+00> : vector<8x64xf32>
    %2 = tpu.matmul %0, %1, %cst {dimension_numbers = #tpu.dot_dimension_numbers<[1], [0], [0], [1], [0, 0, 1, 1], [], []>} : vector<8x24xf32>, vector<24x64xf32>, vector<8x64xf32> -> vector<8x64xf32>
    %c0_3 = arith.constant 0 : index
    %c0_4 = arith.constant 0 : index
    %3 = vector.load %arg2[%c0_3, %c0_4] : memref<8x8xf32, #tpu.memory_space<vmem>>, vector<8x8xf32>
    %c0_5 = arith.constant 0 : index
    %c0_6 = arith.constant 0 : index
    %4 = vector.load %arg4[%c0_5, %c0_6] : memref<8x64xf32, #tpu.memory_space<vmem>>, vector<8x64xf32>
    %cst_7 = arith.constant dense<0.000000e+00> : vector<8x64xf32>
    %5 = tpu.matmul %3, %4, %cst_7 {dimension_numbers = #tpu.dot_dimension_numbers<[1], [0], [0], [1], [0, 0, 1, 1], [], []>} : vector<8x8xf32>, vector<8x64xf32>, vector<8x64xf32> -> vector<8x64xf32>
    %6 = arith.addf %2, %5 : vector<8x64xf32>
    %c0_8 = arith.constant 0 : index
    %c0_9 = arith.constant 0 : index
    %7 = vector.load %arg5[%c0_8, %c0_9] : memref<1x64xf32, #tpu.memory_space<vmem>>, vector<1x64xf32>
    %8 = vector.broadcast %7 : vector<1x64xf32> to vector<8x64xf32>
    %9 = arith.addf %6, %8 : vector<8x64xf32>
    %cst_10 = arith.constant 0.000000e+00 : f32
    %10 = vector.broadcast %cst_10 : f32 to vector<8x64xf32>
    %11 = arith.maximumf %9, %10 : vector<8x64xf32>
    %c0_11 = arith.constant 0 : index
    %c0_12 = arith.constant 0 : index
    %12 = vector.load %arg6[%c0_11, %c0_12] : memref<64x64xf32, #tpu.memory_space<vmem>>, vector<64x64xf32>
    %cst_13 = arith.constant dense<0.000000e+00> : vector<8x64xf32>
    %13 = tpu.matmul %11, %12, %cst_13 {dimension_numbers = #tpu.dot_dimension_numbers<[1], [0], [0], [1], [0, 0, 1, 1], [], []>} : vector<8x64xf32>, vector<64x64xf32>, vector<8x64xf32> -> vector<8x64xf32>
    %c0_14 = arith.constant 0 : index
    %c0_15 = arith.constant 0 : index
    %14 = vector.load %arg7[%c0_14, %c0_15] : memref<1x64xf32, #tpu.memory_space<vmem>>, vector<1x64xf32>
    %15 = vector.broadcast %14 : vector<1x64xf32> to vector<8x64xf32>
    %16 = arith.addf %13, %15 : vector<8x64xf32>
    %cst_16 = arith.constant 0.000000e+00 : f32
    %17 = vector.broadcast %cst_16 : f32 to vector<8x64xf32>
    %18 = arith.maximumf %16, %17 : vector<8x64xf32>
    %c0_17 = arith.constant 0 : index
    %c0_18 = arith.constant 0 : index
    %19 = vector.load %arg8[%c0_17, %c0_18] : memref<64x2xf32, #tpu.memory_space<vmem>>, vector<64x2xf32>
    %cst_19 = arith.constant dense<0.000000e+00> : vector<8x2xf32>
    %20 = tpu.matmul %18, %19, %cst_19 {dimension_numbers = #tpu.dot_dimension_numbers<[1], [0], [0], [1], [0, 0, 1, 1], [], []>} : vector<8x64xf32>, vector<64x2xf32>, vector<8x2xf32> -> vector<8x2xf32>
    %c0_20 = arith.constant 0 : index
    %c0_21 = arith.constant 0 : index
    %21 = vector.load %arg9[%c0_20, %c0_21] : memref<1x2xf32, #tpu.memory_space<vmem>>, vector<1x2xf32>
    %22 = vector.broadcast %21 : vector<1x2xf32> to vector<8x2xf32>
    %23 = arith.addf %20, %22 : vector<8x2xf32>
    %c0_22 = arith.constant 0 : index
    %c0_23 = arith.constant 0 : index
    %24 = vector.load %arg10[%c0_22, %c0_23] : memref<8x2xf32, #tpu.memory_space<vmem>>, vector<8x2xf32>
    tpu.vector_store %arg10[%c0_22, %c0_23], %23 {strides = array<i32>} : memref<8x2xf32, #tpu.memory_space<vmem>>, vector<8x2xf32>,
    return
  }
  func.func @transform_0(%arg0: i32) -> (i32, i32) {
    %c0_i32 = arith.constant 0 : i32
    %c0_i32_0 = arith.constant 0 : i32
    return %arg0, %c0_i32 : i32, i32
  }
  func.func @transform_1(%arg0: i32) -> (i32, i32) {
    %c0_i32 = arith.constant 0 : i32
    %c0_i32_0 = arith.constant 0 : i32
    return %arg0, %c0_i32 : i32, i32
  }
  func.func @transform_2(%arg0: i32) -> (i32, i32) {
    %c0_i32 = arith.constant 0 : i32
    %c0_i32_0 = arith.constant 0 : i32
    %c0_i32_1 = arith.constant 0 : i32
    return %c0_i32, %c0_i32_0 : i32, i32
  }
  func.func @transform_3(%arg0: i32) -> (i32, i32) {
    %c0_i32 = arith.constant 0 : i32
    %c0_i32_0 = arith.constant 0 : i32
    %c0_i32_1 = arith.constant 0 : i32
    return %c0_i32, %c0_i32_0 : i32, i32
  }
  func.func @transform_4(%arg0: i32) -> (i32, i32) {
    %c0_i32 = arith.constant 0 : i32
    %c0_i32_0 = arith.constant 0 : i32
    %c0_i32_1 = arith.constant 0 : i32
    return %c0_i32, %c0_i32_0 : i32, i32
  }
  func.func @transform_5(%arg0: i32) -> (i32, i32) {
    %c0_i32 = arith.constant 0 : i32
    %c0_i32_0 = arith.constant 0 : i32
    %c0_i32_1 = arith.constant 0 : i32
    return %c0_i32, %c0_i32_0 : i32, i32
  }
  func.func @transform_6(%arg0: i32) -> (i32, i32) {
    %c0_i32 = arith.constant 0 : i32
    %c0_i32_0 = arith.constant 0 : i32
    %c0_i32_1 = arith.constant 0 : i32
    return %c0_i32, %c0_i32_0 : i32, i32
  }
  func.func @transform_7(%arg0: i32) -> (i32, i32) {
    %c0_i32 = arith.constant 0 : i32
    %c0_i32_0 = arith.constant 0 : i32
    %c0_i32_1 = arith.constant 0 : i32
    return %c0_i32, %c0_i32_0 : i32, i32
  }
  func.func @transform_8(%arg0: i32) -> (i32, i32) {
    %c0_i32 = arith.constant 0 : i32
    %c0_i32_0 = arith.constant 0 : i32
    %c0_i32_1 = arith.constant 0 : i32
    return %c0_i32, %c0_i32_0 : i32, i32
  }
  func.func @transform_9(%arg0: i32) -> (i32, i32) {
    %c0_i32 = arith.constant 0 : i32
    %c0_i32_0 = arith.constant 0 : i32
    return %arg0, %c0_i32 : i32, i32
  }
}

</mosaic_0001>

<llo_original>
// kernel: soft_q_forward.1
$region0: #{soft_q_forward.1}
  #allocation0 [shape = 'u32[]', space=smem, size = 0x4, offset = 0x4, fixed_abs, tag = 'smem constant byte address 0x4 - core index']
  #allocation1 [shape = 'u32[72,128]{1,0:T(1,128)}', space=vmem, size = 0x9000, scoped, tag = 'internal scratch']
  %s0 = inlined_call_operand.vmem [shape: f32[8,24], index: 0, kind: input, shape index: {}]
  %s1 = inlined_call_operand.vmem [shape: f32[8,8], index: 1, kind: input, shape index: {}]
  %s2 = inlined_call_operand.vmem [shape: f32[24,64], index: 2, kind: input, shape index: {}]
  %s3 = inlined_call_operand.vmem [shape: f32[8,64], index: 3, kind: input, shape index: {}]
  %s4 = inlined_call_operand.vmem [shape: f32[1,64], index: 4, kind: input, shape index: {}]
  %s5 = inlined_call_operand.vmem [shape: f32[64,64], index: 5, kind: input, shape index: {}]
  %s6 = inlined_call_operand.vmem [shape: f32[1,64], index: 6, kind: input, shape index: {}]
  %s7 = inlined_call_operand.vmem [shape: f32[64,2], index: 7, kind: input, shape index: {}]
  %s8 = inlined_call_operand.vmem [shape: f32[1,2], index: 8, kind: input, shape index: {}]
  %s9 = inlined_call_operand.vmem [shape: f32[8,2], index: 9, kind: output, shape index: {}]
  %s10 = sld [smem:[#allocation0]]
  $region46: #{soft_q_forward.1} parent=0
    _
  %s12 = ssub.s32 1, %s10
  %s13 = scalar_select 0, %s12, %s10
  // Predicated region
  $region2: #{soft_q_forward.1} parent=0 // pred_check
    _
  $region3: #{soft_q_forward.1} parent=0 // pred_check_branch
    %15 = sbr.rel (0) target = $region5
  $region4: #{soft_q_forward.1} parent=0 // pred_region
    _
  $region5: #{soft_q_forward.1} parent=0 // pred_fallthru
    _
  // Predicated region
  $region6: #{soft_q_forward.1} parent=0 // pred_check
    _
  $region7: #{soft_q_forward.1} parent=0 // pred_check_branch
    %17 = sbr.rel (0) target = $region9
  $region8: #{soft_q_forward.1} parent=0 // pred_region
    _
  $region9: #{soft_q_forward.1} parent=0 // pred_fallthru
    _
  // Predicated region
  $region10: #{soft_q_forward.1} parent=0 // pred_check
    _
  $region11: #{soft_q_forward.1} parent=0 // pred_check_branch
    %19 = sbr.rel (0) target = $region13
  $region12: #{soft_q_forward.1} parent=0 // pred_region
    _
  $region13: #{soft_q_forward.1} parent=0 // pred_fallthru
    _
  // Predicated region
  $region14: #{soft_q_forward.1} parent=0 // pred_check
    _
  $region15: #{soft_q_forward.1} parent=0 // pred_check_branch
    %21 = sbr.rel (0) target = $region17
  $region16: #{soft_q_forward.1} parent=0 // pred_region
    _
  $region17: #{soft_q_forward.1} parent=0 // pred_fallthru
    _
  // Predicated region
  $region18: #{soft_q_forward.1} parent=0 // pred_check
    _
  $region19: #{soft_q_forward.1} parent=0 // pred_check_branch
    %23 = sbr.rel (0) target = $region21
  $region20: #{soft_q_forward.1} parent=0 // pred_region
    _
  $region21: #{soft_q_forward.1} parent=0 // pred_fallthru
    _
  // Predicated region
  $region22: #{soft_q_forward.1} parent=0 // pred_check
    _
  $region23: #{soft_q_forward.1} parent=0 // pred_check_branch
    %25 = sbr.rel (0) target = $region25
  $region24: #{soft_q_forward.1} parent=0 // pred_region
    _
  $region25: #{soft_q_forward.1} parent=0 // pred_fallthru
    _
  // Predicated region
  $region26: #{soft_q_forward.1} parent=0 // pred_check
    _
  $region27: #{soft_q_forward.1} parent=0 // pred_check_branch
    %27 = sbr.rel (0) target = $region29
  $region28: #{soft_q_forward.1} parent=0 // pred_region
    _
  $region29: #{soft_q_forward.1} parent=0 // pred_fallthru
    _
  // Predicated region
  $region30: #{soft_q_forward.1} parent=0 // pred_check
    _
  $region31: #{soft_q_forward.1} parent=0 // pred_check_branch
    %29 = sbr.rel (0) target = $region33
  $region32: #{soft_q_forward.1} parent=0 // pred_region
    _
  $region33: #{soft_q_forward.1} parent=0 // pred_fallthru
    _
  // Predicated region
  $region34: #{soft_q_forward.1} parent=0 // pred_check
    _
  $region35: #{soft_q_forward.1} parent=0 // pred_check_branch
    %31 = sbr.rel (0) target = $region37
  $region36: #{soft_q_forward.1} parent=0 // pred_region
    _
  $region37: #{soft_q_forward.1} parent=0 // pred_fallthru
    _
  %v32 = vld [vmem:[%s0] sm:$0xff]
  %v33 = vld [vmem:[%s2] sm:$0xff]
  %v34 = vld [vmem:[%s2 + $0x8] sm:$0xff]
  %v35 = vld [vmem:[%s2 + $0x10] sm:$0xff]
  %v36 = vld [vmem:[%s1] sm:$0xff]
  %v37 = vld [vmem:[%s3] sm:$0xff]
  %vm38 = vcmask 64512
  %v40 = vsel %vm38, %v36, 0
  %42 = vmatpush.msra.mxu0 0.0
  %43 = vmatpush.msra.mxu0 0.0
  %44 = vmatpush.msra.mxu0 0.0
  %45 = vmatpush.msra.mxu0 0.0
  %46 = vmatpush.msra.mxu0 0.0
  %47 = vmatpush.msra.mxu0 0.0
  %48 = vmatpush.msra.mxu0 0.0
  %49 = vmatpush.msra.mxu0 0.0
  %50 = vmatpush.msra.mxu0 0.0
  %51 = vmatpush.msra.mxu0 0.0
  %52 = vmatpush.msra.mxu0 0.0
  %53 = vmatpush.msra.mxu0 0.0
  %54 = vmatpush.msra.mxu0 0.0
  %55 = vmatpush.msra.mxu0 0.0
  %56 = vmatpush.msra.mxu0 0.0
  %57 = vmatpush.msra.mxu0 %v37
  %58 = vmatmul.f32.gmra.mxu0 %v40
  %v59 = vpop.f32.mrf.mxu0
  %v60 = vadd.f32 0.0, %v59
  %61 = vdwg.mxu0
  %vm62 = vcmask 195584
  %v64 = vsel %vm62, %v32, 0
  %66 = vmatpush.msra.mxu0 0.0
  %67 = vmatpush.msra.mxu0 0.0
  %68 = vmatpush.msra.mxu0 0.0
  %69 = vmatpush.msra.mxu0 0.0
  %70 = vmatpush.msra.mxu0 0.0
  %71 = vmatpush.msra.mxu0 0.0
  %72 = vmatpush.msra.mxu0 0.0
  %73 = vmatpush.msra.mxu0 0.0
  %74 = vmatpush.msra.mxu0 0.0
  %75 = vmatpush.msra.mxu0 0.0
  %76 = vmatpush.msra.mxu0 0.0
  %77 = vmatpush.msra.mxu0 0.0
  %78 = vmatpush.msra.mxu0 0.0
  %79 = vmatpush.msra.mxu0 %v35
  %80 = vmatpush.msra.mxu0 %v34
  %81 = vmatpush.msra.mxu0 %v33
  %82 = vmatmul.f32.gmra.mxu0 %v64
  %v83 = vpop.f32.mrf.mxu0
  %v84 = vadd.f32 %v60, %v83
  %85 = vdwg.mxu0
  %v86 = vld [vmem:[%s4] sm:$0x1]
  %v88 = vperm.slane %v86, 0
  %v90 = vadd.f32 %v84, %v88
  %v91 = vmax.f32 %v90, 0.0
  %v92 = vld [vmem:[%s5] sm:$0xff]
  %v93 = vld [vmem:[%s5 + $0x8] sm:$0xff]
  %v94 = vld [vmem:[%s5 + $0x10] sm:$0xff]
  %v95 = vld [vmem:[%s5 + $0x18] sm:$0xff]
  %v96 = vld [vmem:[%s5 + $0x20] sm:$0xff]
  %v97 = vld [vmem:[%s5 + $0x28] sm:$0xff]
  %v98 = vld [vmem:[%s5 + $0x30] sm:$0xff]
  %v99 = vld [vmem:[%s5 + $0x38] sm:$0xff]
  %v100 = vld [vmem:[%s6] sm:$0x1]
  %v102 = vperm.slane %v100, 0
  %vm104 = vcmask 523264
  %v106 = vsel %vm104, %v91, 0
  %108 = vmatpush.msra.mxu0 0.0
  %109 = vmatpush.msra.mxu0 0.0
  %110 = vmatpush.msra.mxu0 0.0
  %111 = vmatpush.msra.mxu0 0.0
  %112 = vmatpush.msra.mxu0 0.0
  %113 = vmatpush.msra.mxu0 0.0
  %114 = vmatpush.msra.mxu0 0.0
  %115 = vmatpush.msra.mxu0 0.0
  %116 = vmatpush.msra.mxu0 %v99
  %117 = vmatpush.msra.mxu0 %v98
  %118 = vmatpush.msra.mxu0 %v97
  %119 = vmatpush.msra.mxu0 %v96
  %120 = vmatpush.msra.mxu0 %v95
  %121 = vmatpush.msra.mxu0 %v94
  %122 = vmatpush.msra.mxu0 %v93
  %123 = vmatpush.msra.mxu0 %v92
  %124 = vmatmul.f32.gmra.mxu0 %v106
  %v125 = vpop.f32.mrf.mxu0
  %v126 = vadd.f32 %v102, %v125
  %127 = vdwg.mxu0
  %v128 = vmax.f32 %v126, 0.0
  %v129 = vld [vmem:[%s7] sm:$0xff]
  %v130 = vld [vmem:[%s7 + $0x8] sm:$0xff]
  %v131 = vld [vmem:[%s7 + $0x10] sm:$0xff]
  %v132 = vld [vmem:[%s7 + $0x18] sm:$0xff]
  %v133 = vld [vmem:[%s7 + $0x20] sm:$0xff]
  %v134 = vld [vmem:[%s7 + $0x28] sm:$0xff]
  %v135 = vld [vmem:[%s7 + $0x30] sm:$0xff]
  %v136 = vld [vmem:[%s7 + $0x38] sm:$0xff]
  %v137 = vld [vmem:[%s8] sm:$0x1]
  %v139 = vperm.slane %v137, 0
  %v142 = vsel %vm104, %v128, 0
  %144 = vmatpush.msra.mxu0 0.0
  %145 = vmatpush.msra.mxu0 0.0
  %146 = vmatpush.msra.mxu0 0.0
  %147 = vmatpush.msra.mxu0 0.0
  %148 = vmatpush.msra.mxu0 0.0
  %149 = vmatpush.msra.mxu0 0.0
  %150 = vmatpush.msra.mxu0 0.0
  %151 = vmatpush.msra.mxu0 0.0
  %152 = vmatpush.msra.mxu0 %v136
  %153 = vmatpush.msra.mxu0 %v135
  %154 = vmatpush.msra.mxu0 %v134
  %155 = vmatpush.msra.mxu0 %v133
  %156 = vmatpush.msra.mxu0 %v132
  %157 = vmatpush.msra.mxu0 %v131
  %158 = vmatpush.msra.mxu0 %v130
  %159 = vmatpush.msra.mxu0 %v129
  %160 = vmatmul.f32.gmra.mxu0 %v142
  %v161 = vpop.f32.mrf.mxu0
  %v162 = vadd.f32 %v139, %v161
  %163 = vdwg.mxu0
  %vm164 = vcmask 15360
  %165 = vst.msk [vmem:[%s9] sm:$0xff] %vm164, %v162
  // Predicated region
  $region38: #{soft_q_forward.1} parent=0 // pred_check
    _
  $region39: #{soft_q_forward.1} parent=0 // pred_check_branch
    %167 = sbr.rel (0) target = $region41
  $region40: #{soft_q_forward.1} parent=0 // pred_region
    _
  $region41: #{soft_q_forward.1} parent=0 // pred_fallthru
    _
  // Predicated region
  $region42: #{soft_q_forward.1} parent=0 // pred_check
    _
  $region43: #{soft_q_forward.1} parent=0 // pred_check_branch
    %169 = sbr.rel (0) target = $region45
  $region44: #{soft_q_forward.1} parent=0 // pred_region
    _
  $region45: #{soft_q_forward.1} parent=0 // pred_fallthru
    _

</llo_original>
